<compile_context>
chip_gen: v5e
topology: v5e:2x2
jax: 0.10.0
libtpu: 0.0.40
codegen_flags: <defaults>
</compile_context>

<pallas_src>
from functools import partial

import jax
import jax.numpy as jnp
from jax.experimental import pallas as pl
from jax.experimental.pallas import tpu as pltpu


def _pos_emb_kernel(mult_ref, emb_ref, o_ref, *, tile, max_rows, single_tile):
    """One grid step: write one (B, tile, lane) output block.

    mult_ref : SMEM (n_tiles,) f32      -- per-tile scalar multiplier
    emb_ref  : VMEM (max_rows, lane)    -- whole (lane-packed) embedding table, resident
    o_ref    : VMEM (B, tile, lane)     -- output block (all batch rows of one seq tile)
    """
    si = pl.program_id(0)
    if single_tile:
        start = 0
    else:
        # On every multi-tile path `tile` is a multiple of 8 and divides max_rows,
        # so the start is aligned and the slice never wraps past the table.
        start = pl.multiple_of((si * tile) % max_rows, tile)
    scale = mult_ref[si]
    rows = emb_ref[pl.ds(start, tile), :].astype(jnp.float32) * scale
    vals = rows.astype(o_ref.dtype)
    for b in range(o_ref.shape[0]):  # static batch unroll; the stores are the only real work
        o_ref[b, :, :] = vals


def _choose_tiling(batch, seq, max_seq_len, dim, itemsize,
                   *, vmem_budget=12 * 1024 * 1024, max_tile_rows=2048):
    """Pick (pack, tile):
         pack : consecutive positions folded into the lane axis (lane = pack * dim)
         tile : packed rows per output block
       subject to: no chunk wrap inside a tile (tile*pack | max_seq_len, or a single
       tile covering a <=1-chunk sequence), TPU block-alignment rules, VMEM budget.
    """
    pmax = 128 // dim if (dim < 128 and 128 % dim == 0) else 1
    packs = sorted({p for p in range(1, pmax + 1)
                    if pmax % p == 0 and max_seq_len % p == 0 and seq % p == 0},
                   reverse=True)

    best = None  # (lane, rows, pack, tile)
    for p in packs:
        lane = p * dim
        seq_p, max_p = seq // p, max_seq_len // p
        # multiple-of-8 divisors of the packed table height (no wrap inside a tile)
        cands = [t for t in range(8, max_p + 1, 8) if max_p % t == 0 and t <= seq_p]
        if seq <= max_seq_len:
            cands.append(seq_p)  # single tile covering the whole (single-chunk) sequence
        ok = []
        for t in cands:
            if t * p > max_tile_rows:
                continue
            out_blk = 2 * batch * t * lane * itemsize   # double-buffered output block
            table = 2 * max_p * lane * itemsize         # resident table (count 2x, be safe)
            if out_blk + table <= vmem_budget:
                ok.append(t)
        if ok:
            t = max(ok)
            key = (lane, t * p)                         # prefer lane density, then tile size
            if best is None or key > best[:2]:
                best = (lane, t * p, p, t)

    if best is None:
        raise ValueError(
            f"No TPU-friendly tiling for seq={seq}, max_seq_len={max_seq_len}, dim={dim}; "
            "need max_seq_len divisible by 8 (or seq <= max_seq_len).")
    return best[2], best[3]


def absolute_positional_embedding(x, emb_table, max_seq_len):
    """Pallas-TPU forward of AbsolutePositionalEmbedding.

    x contributes only (batch, seq); returns (batch, seq, dim) in emb_table's dtype.
    """
    batch, seq = x.shape[0], x.shape[1]
    n_pos, dim = emb_table.shape
    assert n_pos == max_seq_len

    itemsize = jnp.dtype(emb_table.dtype).itemsize
    pack, tile = _choose_tiling(batch, seq, max_seq_len, dim, itemsize)

    lane = pack * dim
    seq_p = seq // pack
    max_p = max_seq_len // pack
    n_tiles = pl.cdiv(seq_p, tile)

    # Lane-dense view of the table (pure row-major reshape, no data movement).
    emb_p = emb_table.reshape(max_p, lane)

    # Per-tile scalar multiplier.  A tile never straddles a max_seq_len chunk, so
    # 2**((chunk - 1)/2) (overflow path) is constant within each tile.
    tile_pos = jnp.arange(n_tiles, dtype=jnp.int32) * (tile * pack)
    if seq < max_seq_len:
        mult = jnp.ones((n_tiles,), jnp.float32)
    else:
        chunk = (tile_pos // max_seq_len).astype(jnp.float32)
        mult = (2.0 ** ((chunk - 1.0) * 0.5)).astype(jnp.float32)

    kernel = partial(_pos_emb_kernel, tile=tile, max_rows=max_p,
                     single_tile=(n_tiles == 1))

    out_p = pl.pallas_call(
        kernel,
        out_shape=jax.ShapeDtypeStruct((batch, seq_p, lane), emb_table.dtype),
        grid=(n_tiles,),
        in_specs=[
            pl.BlockSpec(memory_space=pltpu.MemorySpace.SMEM),   # per-tile multipliers
            pl.BlockSpec((max_p, lane), lambda si: (0, 0)),      # whole table, VMEM-resident
        ],
        out_specs=pl.BlockSpec((batch, tile, lane), lambda si: (0, si, 0)),
        compiler_params=pltpu.CompilerParams(
            dimension_semantics=("parallel",),
            vmem_limit_bytes=32 * 1024 * 1024,
        ),
    )(mult, emb_p)

    return out_p.reshape(batch, seq, dim)


def _reference(x, emb_table, max_seq_len):
    """Plain-JAX transcription of the PyTorch forward (correctness oracle)."""
    b, seq = x.shape[0], x.shape[1]
    dim = emb_table.shape[1]
    if seq < max_seq_len:
        return jnp.broadcast_to(emb_table[None, :seq], (b, seq, dim))
    chunks = []
    mult = 1.0 / 2.0 ** 0.5
    for _ in range(seq // max_seq_len):
        chunks.append(jnp.broadcast_to(emb_table[None], (b, max_seq_len, dim)) * mult)
        mult *= 2.0 ** 0.5
    rem = seq % max_seq_len
    if rem:
        chunks.append(jnp.broadcast_to(emb_table[None, :rem], (b, rem, dim)) * mult)
    return jnp.concatenate(chunks, axis=1)


if __name__ == "__main__":
    key = jax.random.PRNGKey(0)
    k_emb, k_x1, k_x2, k_x3 = jax.random.split(key, 4)

    batch, dim, max_seq_len = 2, 32, 16
    # Deterministic synthetic embedding weight (nn.Embedding(max_seq_len, dim)).
    emb_table = jax.random.normal(k_emb, (max_seq_len, dim), dtype=jnp.float32)

    # Case 1: seq < max_seq_len; Case 2: overflow with remainder; Case 3: seq == max_seq_len.
    for k_x, seq in ((k_x1, 8), (k_x2, 40), (k_x3, 16)):
        x = jax.random.randint(k_x, (batch, seq), 0, 100)
        out = jax.block_until_ready(
            absolute_positional_embedding(x, emb_table, max_seq_len))
        ref = _reference(x, emb_table, max_seq_len)
        assert out.shape == (batch, seq, dim)
        assert jnp.allclose(out, ref, atol=1e-5, rtol=1e-5), f"mismatch for seq={seq}"

    print("KERNEL_OK")
</pallas_src>

<mosaic_0001>
module attributes {stable_mosaic.version = 11 : i64} {
  func.func @_pos_emb_kernel(%arg0: i32, %arg1: memref<1xf32, #tpu.memory_space<smem>>, %arg2: memref<4x128xf32, #tpu.memory_space<vmem>>, %arg3: memref<2x2x128xf32, #tpu.memory_space<vmem>>) attributes {dimension_semantics = [#tpu.dimension_semantics<parallel>], iteration_bounds = array<i64: 1>, scalar_prefetch = 0 : i64, scratch_operands = 0 : i64, tpu.core_type = #tpu.core_type<tc>, window_params = [{transform_indices = @transform_0, window_bounds = array<i64: 1>}, {pipeline_mode = #tpu.pipeline_mode<synchronous>, transform_indices = @transform_1, window_bounds = array<i64: 4, 128>}, {transform_indices = @transform_2, window_bounds = array<i64: 2, 2, 128>}]} {
    %0 = arith.index_cast %arg0 : i32 to index
    %1 = memref.load %arg1[%0] : memref<1xf32, #tpu.memory_space<smem>>
    %c0 = arith.constant 0 : index
    %c0_0 = arith.constant 0 : index
    %2 = vector.load %arg2[%c0, %c0_0] : memref<4x128xf32, #tpu.memory_space<vmem>>, vector<2x128xf32>
    %3 = vector.broadcast %1 : f32 to vector<2x128xf32>
    %4 = arith.mulf %2, %3 : vector<2x128xf32>
    %c0_1 = arith.constant 0 : index
    %c0_2 = arith.constant 0 : index
    %c0_3 = arith.constant 0 : index
    %5 = vector.load %arg3[%c0_1, %c0_2, %c0_3] : memref<2x2x128xf32, #tpu.memory_space<vmem>>, vector<1x2x128xf32>
    %6 = vector.shape_cast %5 : vector<1x2x128xf32> to vector<2x128xf32>
    %7 = vector.shape_cast %4 : vector<2x128xf32> to vector<1x2x128xf32>
    tpu.vector_store %arg3[%c0_1, %c0_2, %c0_3], %7 {strides = array<i32>} : memref<2x2x128xf32, #tpu.memory_space<vmem>>, vector<1x2x128xf32>,
    %c1 = arith.constant 1 : index
    %c0_4 = arith.constant 0 : index
    %c0_5 = arith.constant 0 : index
    %8 = vector.load %arg3[%c1, %c0_4, %c0_5] : memref<2x2x128xf32, #tpu.memory_space<vmem>>, vector<1x2x128xf32>
    %9 = vector.shape_cast %8 : vector<1x2x128xf32> to vector<2x128xf32>
    %10 = vector.shape_cast %4 : vector<2x128xf32> to vector<1x2x128xf32>
    tpu.vector_store %arg3[%c1, %c0_4, %c0_5], %10 {strides = array<i32>} : memref<2x2x128xf32, #tpu.memory_space<vmem>>, vector<1x2x128xf32>,
    return
  }
  func.func @transform_0(%arg0: i32) -> i32 {
    %c0_i32 = arith.constant 0 : i32
    %c0_i32_0 = arith.constant 0 : i32
    return %c0_i32 : i32
  }
  func.func @transform_1(%arg0: i32) -> (i32, i32) {
    %c0_i32 = arith.constant 0 : i32
    %c0_i32_0 = arith.constant 0 : i32
    %c0_i32_1 = arith.constant 0 : i32
    return %c0_i32, %c0_i32_0 : i32, i32
  }
  func.func @transform_2(%arg0: i32) -> (i32, i32, i32) {
    %c0_i32 = arith.constant 0 : i32
    %c0_i32_0 = arith.constant 0 : i32
    %c0_i32_1 = arith.constant 0 : i32
    return %c0_i32, %arg0, %c0_i32_0 : i32, i32, i32
  }
}

</mosaic_0001>

<llo_original>
// kernel: tpu_custom_call.1
$region0: #{tpu_custom_call.1}
  #allocation0 [shape = 'u32[]', space=smem, size = 0x4, offset = 0x4, fixed_abs, tag = 'smem constant byte address 0x4 - core index']
  #allocation1 [shape = 'u32[72,128]{1,0:T(1,128)}', space=vmem, size = 0x9000, scoped, tag = 'internal scratch']
  #allocation2 [shape = 'f32[1]{0:T(128)S(6)}', space=smem, size = 0x200, scoped, tag = 'scoped memory for tpu_custom_call.1']
  %s0 = inlined_call_operand.<no memory space> [shape: f32[1], index: 0, kind: input, shape index: {}]
  %s1 = inlined_call_operand.hbm [shape: f32[4,128], index: 1, kind: input, shape index: {}]
  %s2 = inlined_call_operand.hbm [shape: f32[2,2,128], index: 2, kind: output, shape index: {}]
  %s3 = sld [smem:[#allocation0]]
  $region22: #{tpu_custom_call.1} parent=0
    _
  %s5 = ssub.s32 1, %s3
  %s6 = scalar_select 0, %s5, %s3
  %7 = sst [smem:[#allocation2]] %s0
  $region1: #{tpu_custom_call.1} parent=0
    #allocation3 [shape = 'u8[2048]{0}', space=vmem, size = 0x800, scoped, tag = 'input window, operand 1, single buffered']
    #allocation4 [shape = 's32[1]{0}', space=sflag, size = 0x4, scoped, tag = 'scoped memory for tpu_custom_call.1']
    #allocation5 [shape = 's32[1]{0}', space=sflag, size = 0x4, scoped, tag = 'scoped memory for tpu_custom_call.1']
    #allocation6 [shape = 'u8[2048]{0}', space=vmem, size = 0x800, scoped, tag = 'output window, operand 0, single buffered']
    %8 = vsyncpa [#allocation4], 0
    %9 = vsyncpa [#allocation5], 0
    // Predicated region
    $region2: #{tpu_custom_call.1} parent=1 // pred_check
      _
    $region3: #{tpu_custom_call.1} parent=1 // pred_check_branch
      %11 = sbr.rel (0) target = $region5
    $region4: #{tpu_custom_call.1} parent=1 // pred_region
      _
    $region5: #{tpu_custom_call.1} parent=1 // pred_fallthru
      _
    // Predicated region
    $region6: #{tpu_custom_call.1} parent=1 // pred_check
      _
    $region7: #{tpu_custom_call.1} parent=1 // pred_check_branch
      %13 = sbr.rel (0) target = $region9
    $region8: #{tpu_custom_call.1} parent=1 // pred_region
      %15 = vsyncadd [#allocation4], 0
      %s17 = sshll.u32 %s1, 4
      %s18 = int_to_ptr.hbm [resolvable:$true] %s17
      %s19 = sshll.u32 [#allocation3], 4
      %s20 = int_to_ptr.vmem [resolvable:$true] %s19
      %22 = dma.hbm_to_vmem [thread:$0]  %s18, 64, %s20, [#allocation4]
    $region9: #{tpu_custom_call.1} parent=1 // pred_fallthru
      _
    // Predicated region
    $region10: #{tpu_custom_call.1} parent=1 // pred_check
      _
    $region11: #{tpu_custom_call.1} parent=1 // pred_check_branch
      %24 = sbr.rel (0) target = $region13
    $region12: #{tpu_custom_call.1} parent=1 // pred_region
      %26 = dma.done [#allocation4], 64
    $region13: #{tpu_custom_call.1} parent=1 // pred_fallthru
      _
    %s27 = sld [smem:[#allocation2]]
    %v28 = vld [vmem:[#allocation3] sm:$0x3]
    %v29 = vstv %s27
    %v30 = vmul.f32 %v28, %v29
    %31 = vst [vmem:[#allocation6] sm:$0x3] %v30
    %s32 = scalar_lea.vmem [#allocation6], 2
    %33 = vst [vmem:[%s32] sm:$0x3] %v30
    // Predicated region
    $region14: #{tpu_custom_call.1} parent=1 // pred_check
      _
    $region15: #{tpu_custom_call.1} parent=1 // pred_check_branch
      %35 = sbr.rel (0) target = $region17
    $region16: #{tpu_custom_call.1} parent=1 // pred_region
      %37 = vsyncadd [#allocation5], 0
      %s38 = sshll.u32 [#allocation6], 4
      %s39 = int_to_ptr.vmem [resolvable:$true] %s38
      %s40 = sshll.u32 %s2, 4
      %s41 = int_to_ptr.hbm [resolvable:$true] %s40
      %46 = dma.vmem_to_hbm [thread:$0]  %s39, 64, %s41, [#allocation5], 32, 32, 2
    $region17: #{tpu_custom_call.1} parent=1 // pred_fallthru
      _
    // Predicated region
    $region18: #{tpu_custom_call.1} parent=1 // pred_check
      _
    $region19: #{tpu_custom_call.1} parent=1 // pred_check_branch
      %48 = sbr.rel (0) target = $region21
    $region20: #{tpu_custom_call.1} parent=1 // pred_region
      %50 = dma.done [#allocation5], 64
    $region21: #{tpu_custom_call.1} parent=1 // pred_fallthru
      _
    %51 = vsyncpa [#allocation4], 1
    %52 = vsyncpa [#allocation5], 1

</llo_original>
